<compile_context>
chip_gen: v5e
topology: v5e:2x2
jax: 0.10.0
libtpu: 0.0.40
codegen_flags: <defaults>
</compile_context>

<pallas_src>
import jax
import jax.numpy as jnp
from jax.experimental import pallas as pl
from jax.experimental.pallas import tpu as pltpu


_ACTIVATIONS = {
    "ReLU": lambda x: jnp.maximum(x, 0.0),
    "LeakyReLU": lambda x: jnp.where(x >= 0, x, 0.01 * x),
    "Tanh": jnp.tanh,
    "Sigmoid": jax.nn.sigmoid,
    "ELU": jax.nn.elu,
}


def _round_up(n, m):
    return ((n + m - 1) // m) * m


def _make_mlp_kernel(num_hidden, act, reduce_out):
    """Fused kernel: num_hidden x (Linear -> act) followed by the output Linear."""

    def kernel(*refs):
        # refs = (x, w_0, b_0, ..., w_{H-1}, b_{H-1}, w_out, b_out, out)
        x_ref = refs[0]
        o_ref = refs[-1]
        h_mxu = x_ref[...]                        # bf16, fed straight to the MXU
        h_f32 = h_mxu.astype(jnp.float32)         # only live if num_hidden == 0
        idx = 1
        for _ in range(num_hidden):
            w_ref, b_ref = refs[idx], refs[idx + 1]
            # nn.Dropout(p=0.0) == identity, so it is elided.
            # TODO(synk): training-mode dropout (p>0) would need pltpu.prng_seed +
            # pltpu.stateful_bernoulli here.
            h_f32 = act(
                jnp.dot(h_mxu, w_ref[...], preferred_element_type=jnp.float32)
                + b_ref[...])
            h_mxu = h_f32.astype(jnp.bfloat16)    # bf16 operand for the next matmul
            idx += 2
        wo_ref, bo_ref = refs[idx], refs[idx + 1]
        if reduce_out:
            # out_dim == 1: do the head on the VPU (multiply) + XLU (lane reduce)
            # instead of a 1-output-lane MXU matmul.  f32 throughout.
            out = jnp.sum(h_f32 * wo_ref[...], axis=-1, keepdims=True) + bo_ref[...]
        else:
            out = (jnp.dot(h_mxu, wo_ref[...], preferred_element_type=jnp.float32)
                   + bo_ref[...])
        o_ref[...] = out.astype(o_ref.dtype)

    return kernel


def simple_network_forward(params, x, *, non_linearity="ReLU", batch_tile=512):
    """params: list of (w, b) pairs — hidden layers first, output layer last.
         w: (in_dim, out_dim) float32,  b: (1, out_dim) float32.
       x: (B, input_dim) -> (B, output_dim) float32."""
    act = _ACTIVATIONS[non_linearity]
    num_hidden = len(params) - 1
    B, in_dim = x.shape
    out_dim = params[-1][0].shape[1]
    reduce_out = (out_dim == 1)

    # ---- batch tile -----------------------------------------------------------
    # Multiple of 16 sublanes (bf16 packing).  A large tile is the HBM-roofline
    # lever; the ragged last block is masked by Pallas, so no wrapper-side pad.
    tb = min(batch_tile, _round_up(B, 16))
    # v7x megacore: keep >= 2 grid steps whenever the batch can be split so the
    # "parallel" axis shards across both TensorCores (harmless on v5e/v6e).
    if B > 16 and pl.cdiv(B, tb) < 2:
        tb = _round_up(pl.cdiv(B, 2), 16)
    grid = (pl.cdiv(B, tb),)
    # TODO(synk): if batch_tile is pushed to 1024+, process each tile in 256-512 row
    # sub-chunks via lax.fori_loop(unroll=True) to bound f32 vreg live ranges.

    # ---- operands: bf16 into the MXU, f32 biases / accumulation ----------------
    x_in = x.astype(jnp.bfloat16)
    flat_inputs = [x_in]
    in_specs = [pl.BlockSpec((tb, in_dim), lambda i: (i, 0))]
    for li, (w, b) in enumerate(params):
        if li == num_hidden and reduce_out:
            # Final (H, 1) weight stored as a (1, H) f32 row for the VPU/XLU head.
            w_arr = w.astype(jnp.float32).reshape(1, -1)
        else:
            w_arr = w.astype(jnp.bfloat16)
        b_arr = b.astype(jnp.float32).reshape(1, -1)
        flat_inputs += [w_arr, b_arr]
        # Constant block index -> fetched into VMEM once, reused across grid steps.
        in_specs += [pl.BlockSpec(w_arr.shape, lambda i: (0, 0)),
                     pl.BlockSpec(b_arr.shape, lambda i: (0, 0))]

    # ---- VMEM budget (v5e default scoped limit is only 16 MiB) -----------------
    # Pallas double-buffers every input spec, including the constant-index weights.
    footprint = 2 * tb * in_dim * 2 + 2 * tb * out_dim * 4            # x / out tiles
    footprint += sum(2 * a.size * a.dtype.itemsize for a in flat_inputs[1:])
    max_width = max([in_dim] + [w.shape[1] for w, _ in params])
    footprint += 4 * tb * max_width * 4                               # live f32 h tiles
    vmem_limit = int(min(max(2 * footprint + (2 << 20), 32 << 20), 64 << 20))
    # TODO(synk): for hidden widths where the (2x-buffered) weight set no longer fits
    # VMEM (v7x: 64 MiB/TC), switch that layer to a K/N-tiled reduction grid with an
    # f32 VMEM accumulator instead of shrinking the batch tile.

    return pl.pallas_call(
        _make_mlp_kernel(num_hidden, act, reduce_out),
        out_shape=jax.ShapeDtypeStruct((B, out_dim), jnp.float32),
        grid=grid,
        in_specs=in_specs,
        out_specs=pl.BlockSpec((tb, out_dim), lambda i: (i, 0)),
        compiler_params=pltpu.CompilerParams(
            dimension_semantics=("parallel",),
            vmem_limit_bytes=vmem_limit),
    )(*flat_inputs)


def init_params(key, input_dim, hid_dims, output_dim):
    """Deterministic init matching nn.Linear's default U(-1/sqrt(fan_in), ...).
    Weights are stored (in_dim, out_dim) so the kernel needs no transposes."""
    dims = [input_dim] + list(hid_dims) + [output_dim]
    params = []
    for i in range(len(dims) - 1):
        key, kw, kb = jax.random.split(key, 3)
        bound = 1.0 / float(dims[i]) ** 0.5
        w = jax.random.uniform(kw, (dims[i], dims[i + 1]), jnp.float32, -bound, bound)
        b = jax.random.uniform(kb, (1, dims[i + 1]), jnp.float32, -bound, bound)
        params.append((w, b))
    return params


def _ref_forward(params, x, non_linearity="ReLU"):
    """Pure-JAX f32 reference (dropout p=0.0 is identity)."""
    act = _ACTIVATIONS[non_linearity]
    h = x
    for w, b in params[:-1]:
        h = act(h @ w + b)
    return h @ params[-1][0] + params[-1][1]


if __name__ == "__main__":
    key = jax.random.PRNGKey(0)
    pkey, xkey, p2key, x2key = jax.random.split(key, 4)

    # Module defaults: hid_dims=[128, 64], output_dim=1 (exercises the VPU-reduce head).
    batch, input_dim, hid_dims, output_dim = 2, 32, [128, 64], 1
    params = init_params(pkey, input_dim, hid_dims, output_dim)
    x = jax.random.normal(xkey, (batch, input_dim), jnp.float32)

    out = simple_network_forward(params, x, non_linearity="ReLU")
    out = jax.block_until_ready(out)
    assert out.shape == (batch, output_dim) and out.dtype == jnp.float32
    ref = _ref_forward(params, x)
    assert jnp.allclose(out, ref, atol=1e-2, rtol=1e-2), "mismatch vs JAX reference"

    # Second small config: ragged batch + out_dim>1 (exercises the MXU output head
    # and the masked last grid block).
    params2 = init_params(p2key, 24, [64, 32], 3)
    x2 = jax.random.normal(x2key, (37, 24), jnp.float32)
    out2 = jax.block_until_ready(
        simple_network_forward(params2, x2, non_linearity="Tanh"))
    assert out2.shape == (37, 3)
    ref2 = _ref_forward(params2, x2, non_linearity="Tanh")
    assert jnp.allclose(out2, ref2, atol=1e-2, rtol=1e-2), "mismatch (config 2)"

    print("KERNEL_OK")
</pallas_src>

<mosaic_0001>
module attributes {stable_mosaic.version = 11 : i64} {
  func.func @kernel(%arg0: i32, %arg1: memref<16x32xbf16, #tpu.memory_space<vmem>>, %arg2: memref<32x128xbf16, #tpu.memory_space<vmem>>, %arg3: memref<1x128xf32, #tpu.memory_space<vmem>>, %arg4: memref<128x64xbf16, #tpu.memory_space<vmem>>, %arg5: memref<1x64xf32, #tpu.memory_space<vmem>>, %arg6: memref<1x64xf32, #tpu.memory_space<vmem>>, %arg7: memref<1x1xf32, #tpu.memory_space<vmem>>, %arg8: memref<16x1xf32, #tpu.memory_space<vmem>>) attributes {dimension_semantics = [#tpu.dimension_semantics<parallel>], iteration_bounds = array<i64: 1>, scalar_prefetch = 0 : i64, scratch_operands = 0 : i64, tpu.core_type = #tpu.core_type<tc>, window_params = [{transform_indices = @transform_0, window_bounds = array<i64: 16, 32>}, {pipeline_mode = #tpu.pipeline_mode<synchronous>, transform_indices = @transform_1, window_bounds = array<i64: 32, 128>}, {pipeline_mode = #tpu.pipeline_mode<synchronous>, transform_indices = @transform_2, window_bounds = array<i64: 1, 128>}, {pipeline_mode = #tpu.pipeline_mode<synchronous>, transform_indices = @transform_3, window_bounds = array<i64: 128, 64>}, {pipeline_mode = #tpu.pipeline_mode<synchronous>, transform_indices = @transform_4, window_bounds = array<i64: 1, 64>}, {pipeline_mode = #tpu.pipeline_mode<synchronous>, transform_indices = @transform_5, window_bounds = array<i64: 1, 64>}, {pipeline_mode = #tpu.pipeline_mode<synchronous>, transform_indices = @transform_6, window_bounds = array<i64: 1, 1>}, {transform_indices = @transform_7, window_bounds = array<i64: 16, 1>}]} {
    %c0 = arith.constant 0 : index
    %c0_0 = arith.constant 0 : index
    %0 = vector.load %arg1[%c0, %c0_0] : memref<16x32xbf16, #tpu.memory_space<vmem>>, vector<16x32xbf16>
    %c0_1 = arith.constant 0 : index
    %c0_2 = arith.constant 0 : index
    %1 = vector.load %arg2[%c0_1, %c0_2] : memref<32x128xbf16, #tpu.memory_space<vmem>>, vector<32x128xbf16>
    %cst = arith.constant dense<0.000000e+00> : vector<16x128xf32>
    %2 = tpu.matmul %0, %1, %cst {dimension_numbers = #tpu.dot_dimension_numbers<[1], [0], [0], [1], [0, 0, 1, 1], [], []>} : vector<16x32xbf16>, vector<32x128xbf16>, vector<16x128xf32> -> vector<16x128xf32>
    %c0_3 = arith.constant 0 : index
    %c0_4 = arith.constant 0 : index
    %3 = vector.load %arg3[%c0_3, %c0_4] : memref<1x128xf32, #tpu.memory_space<vmem>>, vector<1x128xf32>
    %4 = vector.broadcast %3 : vector<1x128xf32> to vector<16x128xf32>
    %5 = arith.addf %2, %4 : vector<16x128xf32>
    %cst_5 = arith.constant 0.000000e+00 : f32
    %6 = vector.broadcast %cst_5 : f32 to vector<16x128xf32>
    %7 = arith.maximumf %5, %6 : vector<16x128xf32>
    %8 = arith.truncf %7 : vector<16x128xf32> to vector<16x128xbf16>
    %c0_6 = arith.constant 0 : index
    %c0_7 = arith.constant 0 : index
    %9 = vector.load %arg4[%c0_6, %c0_7] : memref<128x64xbf16, #tpu.memory_space<vmem>>, vector<128x64xbf16>
    %cst_8 = arith.constant dense<0.000000e+00> : vector<16x64xf32>
    %10 = tpu.matmul %8, %9, %cst_8 {dimension_numbers = #tpu.dot_dimension_numbers<[1], [0], [0], [1], [0, 0, 1, 1], [], []>} : vector<16x128xbf16>, vector<128x64xbf16>, vector<16x64xf32> -> vector<16x64xf32>
    %c0_9 = arith.constant 0 : index
    %c0_10 = arith.constant 0 : index
    %11 = vector.load %arg5[%c0_9, %c0_10] : memref<1x64xf32, #tpu.memory_space<vmem>>, vector<1x64xf32>
    %12 = vector.broadcast %11 : vector<1x64xf32> to vector<16x64xf32>
    %13 = arith.addf %10, %12 : vector<16x64xf32>
    %cst_11 = arith.constant 0.000000e+00 : f32
    %14 = vector.broadcast %cst_11 : f32 to vector<16x64xf32>
    %15 = arith.maximumf %13, %14 : vector<16x64xf32>
    %c0_12 = arith.constant 0 : index
    %c0_13 = arith.constant 0 : index
    %16 = vector.load %arg6[%c0_12, %c0_13] : memref<1x64xf32, #tpu.memory_space<vmem>>, vector<1x64xf32>
    %17 = vector.broadcast %16 : vector<1x64xf32> to vector<16x64xf32>
    %18 = arith.mulf %15, %17 : vector<16x64xf32>
    %cst_14 = arith.constant dense<0.000000e+00> : vector<16xf32>
    %19 = vector.multi_reduction <add>, %18, %cst_14 [1] : vector<16x64xf32> to vector<16xf32>
    %20 = vector.shape_cast %19 : vector<16xf32> to vector<16x1xf32>
    %c0_15 = arith.constant 0 : index
    %c0_16 = arith.constant 0 : index
    %21 = vector.load %arg7[%c0_15, %c0_16] : memref<1x1xf32, #tpu.memory_space<vmem>>, vector<1x1xf32>
    %22 = vector.broadcast %21 : vector<1x1xf32> to vector<16x1xf32>
    %23 = arith.addf %20, %22 : vector<16x1xf32>
    %c0_17 = arith.constant 0 : index
    %c0_18 = arith.constant 0 : index
    %24 = vector.load %arg8[%c0_17, %c0_18] : memref<16x1xf32, #tpu.memory_space<vmem>>, vector<16x1xf32>
    tpu.vector_store %arg8[%c0_17, %c0_18], %23 {strides = array<i32>} : memref<16x1xf32, #tpu.memory_space<vmem>>, vector<16x1xf32>,
    return
  }
  func.func @transform_0(%arg0: i32) -> (i32, i32) {
    %c0_i32 = arith.constant 0 : i32
    %c0_i32_0 = arith.constant 0 : i32
    return %arg0, %c0_i32 : i32, i32
  }
  func.func @transform_1(%arg0: i32) -> (i32, i32) {
    %c0_i32 = arith.constant 0 : i32
    %c0_i32_0 = arith.constant 0 : i32
    %c0_i32_1 = arith.constant 0 : i32
    return %c0_i32, %c0_i32_0 : i32, i32
  }
  func.func @transform_2(%arg0: i32) -> (i32, i32) {
    %c0_i32 = arith.constant 0 : i32
    %c0_i32_0 = arith.constant 0 : i32
    %c0_i32_1 = arith.constant 0 : i32
    return %c0_i32, %c0_i32_0 : i32, i32
  }
  func.func @transform_3(%arg0: i32) -> (i32, i32) {
    %c0_i32 = arith.constant 0 : i32
    %c0_i32_0 = arith.constant 0 : i32
    %c0_i32_1 = arith.constant 0 : i32
    return %c0_i32, %c0_i32_0 : i32, i32
  }
  func.func @transform_4(%arg0: i32) -> (i32, i32) {
    %c0_i32 = arith.constant 0 : i32
    %c0_i32_0 = arith.constant 0 : i32
    %c0_i32_1 = arith.constant 0 : i32
    return %c0_i32, %c0_i32_0 : i32, i32
  }
  func.func @transform_5(%arg0: i32) -> (i32, i32) {
    %c0_i32 = arith.constant 0 : i32
    %c0_i32_0 = arith.constant 0 : i32
    %c0_i32_1 = arith.constant 0 : i32
    return %c0_i32, %c0_i32_0 : i32, i32
  }
  func.func @transform_6(%arg0: i32) -> (i32, i32) {
    %c0_i32 = arith.constant 0 : i32
    %c0_i32_0 = arith.constant 0 : i32
    %c0_i32_1 = arith.constant 0 : i32
    return %c0_i32, %c0_i32_0 : i32, i32
  }
  func.func @transform_7(%arg0: i32) -> (i32, i32) {
    %c0_i32 = arith.constant 0 : i32
    %c0_i32_0 = arith.constant 0 : i32
    return %arg0, %c0_i32 : i32, i32
  }
}

</mosaic_0001>

<llo_original>
// kernel: tpu_custom_call.1
$region0: #{tpu_custom_call.1}
  #allocation0 [shape = 'u32[]', space=smem, size = 0x4, offset = 0x4, fixed_abs, tag = 'smem constant byte address 0x4 - core index']
  #allocation1 [shape = 'u32[72,128]{1,0:T(1,128)}', space=vmem, size = 0x9000, scoped, tag = 'internal scratch']
  #allocation2 [shape = 'f32[1,1]{1,0:T(1,128)S(1)}', space=vmem, size = 0x200, scoped, tag = 'scoped memory for tpu_custom_call.1']
  %s0 = inlined_call_operand.vmem [shape: bf16[2,32], index: 0, kind: input, shape index: {}]
  %s1 = inlined_call_operand.vmem [shape: bf16[32,128], index: 1, kind: input, shape index: {}]
  %s2 = inlined_call_operand.vmem [shape: f32[1,128], index: 2, kind: input, shape index: {}]
  %s3 = inlined_call_operand.vmem [shape: bf16[128,64], index: 3, kind: input, shape index: {}]
  %s4 = inlined_call_operand.vmem [shape: f32[1,64], index: 4, kind: input, shape index: {}]
  %s5 = inlined_call_operand.vmem [shape: f32[1,64], index: 5, kind: input, shape index: {}]
  %s6 = inlined_call_operand.<no memory space> [shape: f32[1,1], index: 6, kind: input, shape index: {}]
  %s7 = inlined_call_operand.vmem [shape: f32[2,1], index: 7, kind: output, shape index: {}]
  %s8 = sld [smem:[#allocation0]]
  $region68: #{tpu_custom_call.1} parent=0
    _
  %s10 = ssub.s32 1, %s8
  %s11 = scalar_select 0, %s10, %s8
  %v12 = vstv %s6
  %13 = vst [vmem:[#allocation2] sm:$0x1] %v12
  $region1: #{tpu_custom_call.1} parent=0
    #allocation3 [shape = 'u8[8192]{0}', space=vmem, size = 0x2000, scoped, tag = 'output window, operand 0, single buffered']
    // Predicated region
    $region2: #{tpu_custom_call.1} parent=1 // pred_check
      _
    $region3: #{tpu_custom_call.1} parent=1 // pred_check_branch
      %15 = sbr.rel (0) target = $region5
    $region4: #{tpu_custom_call.1} parent=1 // pred_region
      _
    $region5: #{tpu_custom_call.1} parent=1 // pred_fallthru
      _
    // Predicated region
    $region6: #{tpu_custom_call.1} parent=1 // pred_check
      _
    $region7: #{tpu_custom_call.1} parent=1 // pred_check_branch
      %17 = sbr.rel (0) target = $region9
    $region8: #{tpu_custom_call.1} parent=1 // pred_region
      _
    $region9: #{tpu_custom_call.1} parent=1 // pred_fallthru
      _
    // Predicated region
    $region10: #{tpu_custom_call.1} parent=1 // pred_check
      _
    $region11: #{tpu_custom_call.1} parent=1 // pred_check_branch
      %19 = sbr.rel (0) target = $region13
    $region12: #{tpu_custom_call.1} parent=1 // pred_region
      _
    $region13: #{tpu_custom_call.1} parent=1 // pred_fallthru
      _
    // Predicated region
    $region14: #{tpu_custom_call.1} parent=1 // pred_check
      _
    $region15: #{tpu_custom_call.1} parent=1 // pred_check_branch
      %21 = sbr.rel (0) target = $region17
    $region16: #{tpu_custom_call.1} parent=1 // pred_region
      _
    $region17: #{tpu_custom_call.1} parent=1 // pred_fallthru
      _
    // Predicated region
    $region18: #{tpu_custom_call.1} parent=1 // pred_check
      _
    $region19: #{tpu_custom_call.1} parent=1 // pred_check_branch
      %23 = sbr.rel (0) target = $region21
    $region20: #{tpu_custom_call.1} parent=1 // pred_region
      _
    $region21: #{tpu_custom_call.1} parent=1 // pred_fallthru
      _
    // Predicated region
    $region22: #{tpu_custom_call.1} parent=1 // pred_check
      _
    $region23: #{tpu_custom_call.1} parent=1 // pred_check_branch
      %25 = sbr.rel (0) target = $region25
    $region24: #{tpu_custom_call.1} parent=1 // pred_region
      _
    $region25: #{tpu_custom_call.1} parent=1 // pred_fallthru
      _
    // Predicated region
    $region26: #{tpu_custom_call.1} parent=1 // pred_check
      _
    $region27: #{tpu_custom_call.1} parent=1 // pred_check_branch
      %27 = sbr.rel (0) target = $region29
    $region28: #{tpu_custom_call.1} parent=1 // pred_region
      _
    $region29: #{tpu_custom_call.1} parent=1 // pred_fallthru
      _
    %v29 = vld [vmem:[%s0] sm:$0x1]
    %v30 = vld [vmem:[%s0 + $0x1] sm:$0x1]
    %v31 = vld [vmem:[%s0 + $0x2] sm:$0x1]
    %v32 = vld [vmem:[%s0 + $0x3] sm:$0x1]
    %v33 = vld [vmem:[%s0 + $0x4] sm:$0x1]
    %v34 = vld [vmem:[%s0 + $0x5] sm:$0x1]
    %v35 = vld [vmem:[%s0 + $0x6] sm:$0x1]
    %v36 = vld [vmem:[%s0 + $0x7] sm:$0x1]
    %v37 = vld [vmem:[%s1] sm:$0xf]
    %v38 = vld [vmem:[%s1 + $0x4] sm:$0xf]
    %v39 = vld [vmem:[%s1 + $0x8] sm:$0xf]
    %v40 = vld [vmem:[%s1 + $0xc] sm:$0xf]
    %v41 = vld [vmem:[%s2] sm:$0x1]
    %v43 = vperm.slane %v41, 0
    %46 = vst [vmem:[#allocation1] ss:$9 sm:$0xff] %v29
    %s48 = scalar_lea.vmem [#allocation1], 1
    %49 = vst [vmem:[%s48] ss:$9 sm:$0xff] %v30
    %s51 = scalar_lea.vmem [#allocation1], 2
    %52 = vst [vmem:[%s51] ss:$9 sm:$0xff] %v31
    %s54 = scalar_lea.vmem [#allocation1], 3
    %55 = vst [vmem:[%s54] ss:$9 sm:$0xff] %v32
    %s57 = scalar_lea.vmem [#allocation1], 4
    %58 = vst [vmem:[%s57] ss:$9 sm:$0xff] %v33
    %s60 = scalar_lea.vmem [#allocation1], 5
    %61 = vst [vmem:[%s60] ss:$9 sm:$0xff] %v34
    %s63 = scalar_lea.vmem [#allocation1], 6
    %64 = vst [vmem:[%s63] ss:$9 sm:$0xff] %v35
    %s66 = scalar_lea.vmem [#allocation1], 7
    %67 = vst [vmem:[%s66] ss:$9 sm:$0xff] %v36
    %v68 = vld [vmem:[#allocation1] sm:$0xff]
    %v73 = vunpack.c.l.b16 %v37
    %v74 = vunpack.c.l.b16 %v38
    %v75 = vunpack.c.l.b16 %v39
    %v76 = vunpack.c.l.b16 %v40
    %v77 = vpack.c.b16 %v74, %v73
    %v78 = vpack.c.b16 %v76, %v75
    %vm81 = vcmask 261120
    %v82 = vsel %vm81, %v68, 0
    %84 = vmatpush.bf16.msra.mxu0 0
    %85 = vmatpush.bf16.msra.mxu0 0
    %86 = vmatpush.bf16.msra.mxu0 0
    %87 = vmatpush.bf16.msra.mxu0 0
    %88 = vmatpush.bf16.msra.mxu0 0
    %89 = vmatpush.bf16.msra.mxu0 0
    %90 = vmatpush.bf16.msra.mxu0 %v78
    %91 = vmatpush.bf16.msra.mxu0 %v77
    %92 = vmatmul.bf16.gmra.mxu0 %v82
    %v93 = vpop.f32.mrf.mxu0
    %v94 = vadd.f32 %v43, %v93
    %v95 = vpop.f32.mrf.mxu0
    %v96 = vadd.f32 %v43, %v95
    %97 = vdwg.mxu0
    %v98 = vmax.f32 %v94, 0.0
    %v99 = vmax.f32 %v96, 0.0
    %v100 = vpack.c.bf16 %v99, %v98
    %v101 = vld [vmem:[%s3] sm:$0xf]
    %v102 = vld [vmem:[%s3 + $0x4] sm:$0xf]
    %v103 = vld [vmem:[%s3 + $0x8] sm:$0xf]
    %v104 = vld [vmem:[%s3 + $0xc] sm:$0xf]
    %v105 = vld [vmem:[%s3 + $0x10] sm:$0xf]
    %v106 = vld [vmem:[%s3 + $0x14] sm:$0xf]
    %v107 = vld [vmem:[%s3 + $0x18] sm:$0xf]
    %v108 = vld [vmem:[%s3 + $0x1c] sm:$0xf]
    %v109 = vld [vmem:[%s3 + $0x20] sm:$0xf]
    %v110 = vld [vmem:[%s3 + $0x24] sm:$0xf]
    %v111 = vld [vmem:[%s3 + $0x28] sm:$0xf]
    %v112 = vld [vmem:[%s3 + $0x2c] sm:$0xf]
    %v113 = vld [vmem:[%s3 + $0x30] sm:$0xf]
    %v114 = vld [vmem:[%s3 + $0x34] sm:$0xf]
    %v115 = vld [vmem:[%s3 + $0x38] sm:$0xf]
    %v116 = vld [vmem:[%s3 + $0x3c] sm:$0xf]
    %v117 = vld [vmem:[%s4] sm:$0x1]
    %v119 = vperm.slane %v117, 0
    %v137 = vunpack.c.l.b16 %v101
    %v138 = vunpack.c.l.b16 %v102
    %v139 = vunpack.c.l.b16 %v103
    %v140 = vunpack.c.l.b16 %v104
    %v141 = vunpack.c.l.b16 %v105
    %v142 = vunpack.c.l.b16 %v106
    %v143 = vunpack.c.l.b16 %v107
    %v144 = vunpack.c.l.b16 %v108
    %v145 = vunpack.c.l.b16 %v109
    %v146 = vunpack.c.l.b16 %v110
    %v147 = vunpack.c.l.b16 %v111
    %v148 = vunpack.c.l.b16 %v112
    %v149 = vunpack.c.l.b16 %v113
    %v150 = vunpack.c.l.b16 %v114
    %v151 = vunpack.c.l.b16 %v115
    %v152 = vunpack.c.l.b16 %v116
    %v153 = vpack.c.b16 %v138, %v137
    %v154 = vpack.c.b16 %v140, %v139
    %v155 = vpack.c.b16 %v142, %v141
    %v156 = vpack.c.b16 %v144, %v143
    %v157 = vpack.c.b16 %v146, %v145
    %v158 = vpack.c.b16 %v148, %v147
    %v159 = vpack.c.b16 %v150, %v149
    %v160 = vpack.c.b16 %v152, %v151
    %169 = vmatpush.bf16.msra.mxu0 %v160
    %170 = vmatpush.bf16.msra.mxu0 %v159
    %171 = vmatpush.bf16.msra.mxu0 %v158
    %172 = vmatpush.bf16.msra.mxu0 %v157
    %173 = vmatpush.bf16.msra.mxu0 %v156
    %174 = vmatpush.bf16.msra.mxu0 %v155
    %175 = vmatpush.bf16.msra.mxu0 %v154
    %176 = vmatpush.bf16.msra.mxu0 %v153
    %177 = vmatmul.bf16.gmra.mxu0 %v100
    %v178 = vpop.f32.mrf.mxu0
    %v179 = vadd.f32 %v119, %v178
    %v180 = vpop.f32.mrf.mxu0
    %v181 = vadd.f32 %v119, %v180
    %182 = vdwg.mxu0
    %v183 = vmax.f32 %v179, 0.0
    %v184 = vmax.f32 %v181, 0.0
    %v185 = vld [vmem:[%s5] sm:$0x1]
    %v187 = vperm.slane %v185, 0
    %v189 = vmul.f32 %v183, %v187
    %v190 = vmul.f32 %v184, %v187
    %vm191 = vcmask 523264
    %v192 = vsel %vm191, %v189, 0.0
    %193 = vadd.xlane.f32.xlu0 %v192
    %v194 = vpop.xlane.xlu0 %193
    %v195 = vsel %vm191, %v190, 0.0
    %196 = vadd.xlane.f32.xlu0 %v195
    %v197 = vpop.xlane.xlu0 %196
    %v198 = vld [vmem:[#allocation2] sm:$0x1]
    %v200 = vperm.slane %v198, 0
    %v202 = vadd.f32 %v194, %v200
    %v203 = vadd.f32 %v197, %v200
    %vm204 = vcmask 7168
    %205 = vst.msk [vmem:[#allocation3] sm:$0xff] %vm204, %v202
    %206 = vst.msk [vmem:[#allocation3 + $0x8] sm:$0xff] %vm204, %v203
    // Predicated region
    $region30: #{tpu_custom_call.1} parent=1 // pred_check
      _
    $region31: #{tpu_custom_call.1} parent=1 // pred_check_branch
      %208 = sbr.rel (0) target = $region33
    $region32: #{tpu_custom_call.1} parent=1 // pred_region
      // Predicated region
      $region34: #{tpu_custom_call.1} parent=32 // pred_check
        _
      $region35: #{tpu_custom_call.1} parent=32 // pred_check_branch
        %210 = sbr.rel (0) target = $region37
      $region36: #{tpu_custom_call.1} parent=32 // pred_region
        // Predicated region
        $region38: #{tpu_custom_call.1} parent=36 // pred_check
          _
        $region39: #{tpu_custom_call.1} parent=36 // pred_check_branch
          %212 = sbr.rel target = $region41
        $region40: #{tpu_custom_call.1} parent=36 // pred_region
          // Predicated region
          $region53: #{tpu_custom_call.1} parent=40 // pred_check
            _
          $region54: #{tpu_custom_call.1} parent=40 // pred_check_branch
            %228 = sbr.rel (0) target = $region56
          $region55: #{tpu_custom_call.1} parent=40 // pred_region
            %s230 = ssub.s32 4, 1
            loop: start=0, step=1, limit=1
            $region57: #{tpu_custom_call.1} parent=55 // loop_pre_header
              _
            $region58: #{tpu_custom_call.1} parent=55 // loop_header
              %s232 = sphi 0, %s236
              %p233 = scmp.ge.s32.totalorder %s232, 1
              %s237 = sphi [#allocation3], [#allocation3]
              %s238 = sphi %s7, %s7
            $region59: #{tpu_custom_call.1} parent=55 // loop_header_branch
              %235 = sbr.rel (%p233) target = $region63
            $region60: #{tpu_custom_call.1} parent=55 // loop_body
              %v239 = vld [vmem:[%s237] sm:%s230]
              %240 = vst [vmem:[%s238] sm:%s230] %v239
            $region61: #{tpu_custom_call.1} parent=55 // loop_footer
              %s236 = sadd.s32 1, %s232
            $region62: #{tpu_custom_call.1} parent=55 // loop_footer_branch
              %231 = sbr.rel target = $region58
            $region63: #{tpu_custom_call.1} parent=55 // loop_exit
              _
          $region56: #{tpu_custom_call.1} parent=40 // pred_fallthru
            _
        $region41: #{tpu_custom_call.1} parent=36 // pred_fallthru
          _
        // Predicated region
        $region42: #{tpu_custom_call.1} parent=36 // pred_check
          _
        $region43: #{tpu_custom_call.1} parent=36 // pred_check_branch
          %214 = sbr.rel (0) target = $region45
        $region44: #{tpu_custom_call.1} parent=36 // pred_region
          %s216 = ssub.s32 4, 1
          loop: start=0, step=1, limit=1
          $region46: #{tpu_custom_call.1} parent=44 // loop_pre_header
            _
          $region47: #{tpu_custom_call.1} parent=44 // loop_header
            %s218 = sphi 0, %s222
            %p219 = scmp.ge.s32.totalorder %s218, 1
            %s223 = sphi [#allocation3], [#allocation3]
            %s224 = sphi %s7, %s7
          $region48: #{tpu_custom_call.1} parent=44 // loop_header_branch
            %221 = sbr.rel (%p219) target = $region52
          $region49: #{tpu_custom_call.1} parent=44 // loop_body
            %v225 = vld [vmem:[%s223] sm:%s216]
            %226 = vst [vmem:[%s224] sm:%s216] %v225
          $region50: #{tpu_custom_call.1} parent=44 // loop_footer
            %s222 = sadd.s32 1, %s218
          $region51: #{tpu_custom_call.1} parent=44 // loop_footer_branch
            %217 = sbr.rel target = $region47
          $region52: #{tpu_custom_call.1} parent=44 // loop_exit
            _
        $region45: #{tpu_custom_call.1} parent=36 // pred_fallthru
          _
      $region37: #{tpu_custom_call.1} parent=32 // pred_fallthru
        _
      %241 = vnop
    $region33: #{tpu_custom_call.1} parent=1 // pred_fallthru
      _
    // Predicated region
    $region64: #{tpu_custom_call.1} parent=1 // pred_check
      _
    $region65: #{tpu_custom_call.1} parent=1 // pred_check_branch
      %243 = sbr.rel (0) target = $region67
    $region66: #{tpu_custom_call.1} parent=1 // pred_region
      _
    $region67: #{tpu_custom_call.1} parent=1 // pred_fallthru
      _

</llo_original>
